<compile_context>
chip_gen: v5e
topology: v5e:2x2
jax: 0.10.0
libtpu: 0.0.40
codegen_flags: <defaults>
</compile_context>

<pallas_src>
import functools

import numpy as np
import jax
import jax.numpy as jnp
from jax.experimental import pallas as pl
from jax.experimental.pallas import tpu as pltpu

EPS = 1e-3  # matches nn.BatchNorm1d(..., eps=0.001)

BRANCHES = ("cpf", "npf", "vtx")
IN_CH = {"cpf": 16, "npf": 6, "vtx": 12}
WIDTHS = {"cpf": (64, 32, 32, 8), "npf": (32, 16, 4), "vtx": (64, 32, 32, 8)}
DEPTH = max(len(w) for w in WIDTHS.values())  # 4 fused block-diagonal layers


def _branch_dims(name):
    dims = [IN_CH[name], *WIDTHS[name]]
    while len(dims) < DEPTH + 1:      # identity extension (npf gets a 4th layer)
        dims.append(dims[-1])
    return dims


def _col_layout(d):
    """Column layout at depth boundary d: col 0 = ones, then branch blocks."""
    offs, off = {}, 1
    for name in BRANCHES:
        c = _branch_dims(name)[d]
        offs[name] = (off, c)
        off += c
    return offs, off


# ----------------------------------------------------------------------------
# Kernel: 4 block-diagonal [matmul + ReLU] layers, whole problem in VMEM,
# no grid.  refs = (x_packed, w_packed, out).
# ----------------------------------------------------------------------------
def _fused_kernel(meta, x_ref, w_ref, o_ref):
    x = x_ref[...]                                     # (M, 35) bf16
    y = None
    for row_off, k, n in meta:                         # static Python unroll (4)
        w = w_ref[row_off:row_off + k, 0:n]            # static slice of packed buf
        y = jnp.maximum(
            jnp.dot(x, w, preferred_element_type=jnp.float32), 0.0)  # MXU + f32 acc
        x = y.astype(jnp.bfloat16)                     # bf16 operands for next dot
    o_ref[...] = y                                     # final f32 (M, 21)


# ----------------------------------------------------------------------------
# Host-side (one-time) folding & packing.
# ----------------------------------------------------------------------------
def fold_branch(in_scale, in_shift, layer_params):
    """Fold eval-mode BN affines into conv weights/biases (exact f32 algebra).
    Returns [(Wt:(C_in,C_out), b:(C_out,))] per layer."""
    folded, pre_scale, pre_shift = [], in_scale, in_shift
    for (w, b, sc, sh) in layer_params:
        wf = w * pre_scale[None, :]                    # scale input channels
        bf = b + w @ pre_shift
        folded.append((np.asarray(wf, np.float32).T, np.asarray(bf, np.float32)))
        pre_scale, pre_shift = sc, sh                  # this layer's BN -> next layer
    return folded                                      # last layer's BN is identity


def build_fused_weights(params):
    """Per-depth block-diagonal weights with bias row + ones pass-through,
    packed into one bf16 buffer (static; one-time host cost)."""
    folded = {name: fold_branch(*params[name]) for name in BRANCHES}
    depth_ws = []
    for d in range(DEPTH):
        in_offs, k = _col_layout(d)
        out_offs, n = _col_layout(d + 1)
        w = np.zeros((k, n), np.float32)
        w[0, 0] = 1.0                                  # carry the ones column
        for name in BRANCHES:
            io, ic = in_offs[name]
            oo, oc = out_offs[name]
            if d < len(folded[name]):
                wt, b = folded[name][d]
                w[io:io + ic, oo:oo + oc] = wt
                w[0, oo:oo + oc] = b                   # bias row (folded into matmul)
            else:                                      # identity layer (ReLU-safe)
                w[io:io + ic, oo:oo + oc] = np.eye(ic, dtype=np.float32)
        depth_ws.append(w)

    n_max = max(w.shape[1] for w in depth_ws)
    meta, row = [], 0
    for w in depth_ws:
        meta.append((row, w.shape[0], w.shape[1]))
        row += -(-w.shape[0] // 16) * 16               # align offsets to 16 (bf16 sublanes)
    buf = np.zeros((row, n_max), np.float32)
    for (ro, k, n), w in zip(meta, depth_ws):
        buf[ro:ro + k, :n] = w
    return jnp.asarray(buf, dtype=jnp.bfloat16), tuple(meta)


def pack_inputs(cpf, npf, vtx):
    """One (M, 35) bf16 block-layout input: disjoint row blocks per branch,
    disjoint channel column blocks per branch, ones in column 0."""
    in_offs, k0 = _col_layout(0)
    xs = {"cpf": cpf, "npf": npf, "vtx": vtx}
    rows_meta, row = {}, 0
    for name in BRANCHES:
        b, s, _ = xs[name].shape
        rows_meta[name] = (row, b * s, b, s)
        row += b * s
    x = jnp.zeros((row, k0), jnp.float32)
    x = x.at[:, 0].set(1.0)
    for name in BRANCHES:
        ro, m, _, _ = rows_meta[name]
        co, c = in_offs[name]
        x = x.at[ro:ro + m, co:co + c].set(xs[name].reshape(m, c))
    return x.astype(jnp.bfloat16), rows_meta, row


def input_process(cpf, npf, vtx, fused_weights):
    w_buf, meta = fused_weights
    x_packed, rows_meta, m_total = pack_inputs(cpf, npf, vtx)
    out_offs, n_last = _col_layout(DEPTH)

    flops = 2 * m_total * sum(k * n for _, k, n in meta)
    bytes_acc = x_packed.size * 2 + w_buf.size * 2 + m_total * n_last * 4
    cost = pl.CostEstimate(flops=flops, transcendentals=0, bytes_accessed=bytes_acc)

    vmem = pl.BlockSpec(memory_space=pltpu.MemorySpace.VMEM)
    out = pl.pallas_call(
        functools.partial(_fused_kernel, meta),
        out_shape=jax.ShapeDtypeStruct((m_total, n_last), jnp.float32),
        in_specs=[vmem, vmem],
        out_specs=vmem,
        cost_estimate=cost,
    )(x_packed, w_buf)

    results = []
    for name in BRANCHES:
        ro, m, b, s = rows_meta[name]
        co, c = out_offs[name]
        results.append(out[ro:ro + m, co:co + c].reshape(b, s, c))
    return tuple(results)


# ----------------------------------------------------------------------------
# Deterministic synthetic parameters (no checkpoint load).
# ----------------------------------------------------------------------------
def fold_bn(key, c):
    k1, k2, k3, k4 = jax.random.split(key, 4)
    gamma = 1.0 + 0.1 * jax.random.normal(k1, (c,), jnp.float32)
    beta = 0.1 * jax.random.normal(k2, (c,), jnp.float32)
    mean = 0.1 * jax.random.normal(k3, (c,), jnp.float32)
    var = 0.5 + jnp.abs(jax.random.normal(k4, (c,), jnp.float32))
    scale = gamma / jnp.sqrt(var + EPS)
    shift = beta - mean * scale
    return scale, shift


def make_layer(key, c_in, c_out, norm):
    kw, kb, kbn = jax.random.split(key, 3)
    w = 0.1 * jax.random.normal(kw, (c_out, c_in), jnp.float32)
    b = 0.1 * jax.random.normal(kb, (c_out,), jnp.float32)
    if norm:
        sc, sh = fold_bn(kbn, c_out)
    else:
        sc = jnp.ones((c_out,), jnp.float32)
        sh = jnp.zeros((c_out,), jnp.float32)
    return (w, b, sc, sh)


def make_branch_params(key, c_in, widths):
    keys = jax.random.split(key, len(widths) + 1)
    in_scale, in_shift = fold_bn(keys[0], c_in)
    layers, prev = [], c_in
    for i, c_out in enumerate(widths):
        layers.append(make_layer(keys[i + 1], prev, c_out, norm=i < len(widths) - 1))
        prev = c_out
    return in_scale, in_shift, layers


# ----------------------------------------------------------------------------
# Pure-JAX reference (unfolded, mirrors the PyTorch eval-mode graph exactly).
# ----------------------------------------------------------------------------
def ref_branch(x_bsc, in_scale, in_shift, layer_params):
    y = jnp.swapaxes(x_bsc, 1, 2)                      # (B, C, S)
    y = y * in_scale[None, :, None] + in_shift[None, :, None]
    for (w, b, sc, sh) in layer_params:
        y = jnp.einsum("oc,bcs->bos", w, y) + b[None, :, None]
        y = jnp.maximum(y, 0.0)
        y = y * sc[None, :, None] + sh[None, :, None]
    return jnp.swapaxes(y, 1, 2)


if __name__ == "__main__":
    key = jax.random.PRNGKey(0)
    k_cpf, k_npf, k_vtx, kp_cpf, kp_npf, kp_vtx = jax.random.split(key, 6)

    B = 2
    # (batch, seq, features); the module transposes internally to (B, C, L).
    cpf = jax.random.normal(k_cpf, (B, 16, 16), jnp.float32)
    npf = jax.random.normal(k_npf, (B, 8, 6), jnp.float32)
    vtx = jax.random.normal(k_vtx, (B, 4, 12), jnp.float32)

    params = {
        "cpf": make_branch_params(kp_cpf, 16, list(WIDTHS["cpf"])),
        "npf": make_branch_params(kp_npf, 6, list(WIDTHS["npf"])),
        "vtx": make_branch_params(kp_vtx, 12, list(WIDTHS["vtx"])),
    }

    fused_weights = build_fused_weights(params)        # one-time host fold + pack
    cpf_out, npf_out, vtx_out = input_process(cpf, npf, vtx, fused_weights)
    jax.block_until_ready((cpf_out, npf_out, vtx_out))

    # Reference check (eval-mode semantics, f32, BN not folded).
    cpf_ref = ref_branch(cpf, *params["cpf"])
    npf_ref = ref_branch(npf, *params["npf"])
    vtx_ref = ref_branch(vtx, *params["vtx"])

    assert cpf_out.shape == (B, 16, 8)
    assert npf_out.shape == (B, 8, 4)
    assert vtx_out.shape == (B, 4, 8)
    # Tolerance re-validated for bf16 MXU operands with f32 accumulation.
    assert jnp.allclose(cpf_out, cpf_ref, atol=3e-2, rtol=3e-2)
    assert jnp.allclose(npf_out, npf_ref, atol=3e-2, rtol=3e-2)
    assert jnp.allclose(vtx_out, vtx_ref, atol=3e-2, rtol=3e-2)

    # TODO(synk): training-mode BatchNorm (batch statistics, momentum=0.6
    # running-stat updates) and stochastic Dropout are not implemented;
    # eval-mode semantics (running stats folded into the convs, dropout=identity)
    # are used.
    print("KERNEL_OK")
</pallas_src>

<mosaic_0001>
module attributes {stable_mosaic.version = 11 : i64} {
  func.func @_fused_kernel(%arg0: memref<56x35xbf16, #tpu.memory_space<vmem>>, %arg1: memref<400x161xbf16, #tpu.memory_space<vmem>>, %arg2: memref<56x21xf32, #tpu.memory_space<vmem>>) attributes {dimension_semantics = [], scalar_prefetch = 0 : i64, scratch_operands = 0 : i64, tpu.core_type = #tpu.core_type<tc>} {
    %c0 = arith.constant 0 : index
    %c0_0 = arith.constant 0 : index
    %0 = vector.load %arg0[%c0, %c0_0] : memref<56x35xbf16, #tpu.memory_space<vmem>>, vector<56x35xbf16>
    %c0_1 = arith.constant 0 : index
    %c0_2 = arith.constant 0 : index
    %1 = vector.load %arg1[%c0_1, %c0_2] : memref<400x161xbf16, #tpu.memory_space<vmem>>, vector<35x161xbf16>
    %cst = arith.constant dense<0.000000e+00> : vector<56x161xf32>
    %2 = tpu.matmul %0, %1, %cst {dimension_numbers = #tpu.dot_dimension_numbers<[1], [0], [0], [1], [0, 0, 1, 1], [], []>} : vector<56x35xbf16>, vector<35x161xbf16>, vector<56x161xf32> -> vector<56x161xf32>
    %cst_3 = arith.constant 0.000000e+00 : f32
    %3 = vector.broadcast %cst_3 : f32 to vector<56x161xf32>
    %4 = arith.maximumf %2, %3 : vector<56x161xf32>
    %5 = arith.truncf %4 : vector<56x161xf32> to vector<56x161xbf16>
    %c48 = arith.constant 48 : index
    %c0_4 = arith.constant 0 : index
    %6 = vector.load %arg1[%c48, %c0_4] : memref<400x161xbf16, #tpu.memory_space<vmem>>, vector<161x81xbf16>
    %cst_5 = arith.constant dense<0.000000e+00> : vector<56x81xf32>
    %7 = tpu.matmul %5, %6, %cst_5 {dimension_numbers = #tpu.dot_dimension_numbers<[1], [0], [0], [1], [0, 0, 1, 1], [], []>} : vector<56x161xbf16>, vector<161x81xbf16>, vector<56x81xf32> -> vector<56x81xf32>
    %cst_6 = arith.constant 0.000000e+00 : f32
    %8 = vector.broadcast %cst_6 : f32 to vector<56x81xf32>
    %9 = arith.maximumf %7, %8 : vector<56x81xf32>
    %10 = arith.truncf %9 : vector<56x81xf32> to vector<56x81xbf16>
    %c224 = arith.constant 224 : index
    %c0_7 = arith.constant 0 : index
    %11 = vector.load %arg1[%c224, %c0_7] : memref<400x161xbf16, #tpu.memory_space<vmem>>, vector<81x69xbf16>
    %cst_8 = arith.constant dense<0.000000e+00> : vector<56x69xf32>
    %12 = tpu.matmul %10, %11, %cst_8 {dimension_numbers = #tpu.dot_dimension_numbers<[1], [0], [0], [1], [0, 0, 1, 1], [], []>} : vector<56x81xbf16>, vector<81x69xbf16>, vector<56x69xf32> -> vector<56x69xf32>
    %cst_9 = arith.constant 0.000000e+00 : f32
    %13 = vector.broadcast %cst_9 : f32 to vector<56x69xf32>
    %14 = arith.maximumf %12, %13 : vector<56x69xf32>
    %15 = arith.truncf %14 : vector<56x69xf32> to vector<56x69xbf16>
    %c320 = arith.constant 320 : index
    %c0_10 = arith.constant 0 : index
    %16 = vector.load %arg1[%c320, %c0_10] : memref<400x161xbf16, #tpu.memory_space<vmem>>, vector<69x21xbf16>
    %cst_11 = arith.constant dense<0.000000e+00> : vector<56x21xf32>
    %17 = tpu.matmul %15, %16, %cst_11 {dimension_numbers = #tpu.dot_dimension_numbers<[1], [0], [0], [1], [0, 0, 1, 1], [], []>} : vector<56x69xbf16>, vector<69x21xbf16>, vector<56x21xf32> -> vector<56x21xf32>
    %cst_12 = arith.constant 0.000000e+00 : f32
    %18 = vector.broadcast %cst_12 : f32 to vector<56x21xf32>
    %19 = arith.maximumf %17, %18 : vector<56x21xf32>
    %c0_13 = arith.constant 0 : index
    %c0_14 = arith.constant 0 : index
    %20 = vector.load %arg2[%c0_13, %c0_14] : memref<56x21xf32, #tpu.memory_space<vmem>>, vector<56x21xf32>
    tpu.vector_store %arg2[%c0_13, %c0_14], %19 {strides = array<i32>} : memref<56x21xf32, #tpu.memory_space<vmem>>, vector<56x21xf32>,
    return
  }
}

</mosaic_0001>

<llo_original>
// kernel: tpu_custom_call.1
$region0: #{tpu_custom_call.1}
  #allocation0 [shape = 'u32[]', space=smem, size = 0x4, offset = 0x4, fixed_abs, tag = 'smem constant byte address 0x4 - core index']
  #allocation1 [shape = 'u32[72,128]{1,0:T(1,128)}', space=vmem, size = 0x9000, scoped, tag = 'internal scratch']
  %s0 = inlined_call_operand.vmem [shape: bf16[56,35], index: 0, kind: input, shape index: {}]
  %s1 = inlined_call_operand.vmem [shape: bf16[400,161], index: 1, kind: input, shape index: {}]
  %s2 = inlined_call_operand.vmem [shape: f32[56,21], index: 2, kind: output, shape index: {}]
  %s3 = sld [smem:[#allocation0]]
  $region18: #{tpu_custom_call.1} parent=0
    _
  %s5 = ssub.s32 1, %s3
  %s6 = scalar_select 0, %s5, %s3
  // Predicated region
  $region2: #{tpu_custom_call.1} parent=0 // pred_check
    _
  $region3: #{tpu_custom_call.1} parent=0 // pred_check_branch
    %8 = sbr.rel (0) target = $region5
  $region4: #{tpu_custom_call.1} parent=0 // pred_region
    _
  $region5: #{tpu_custom_call.1} parent=0 // pred_fallthru
    _
  // Predicated region
  $region6: #{tpu_custom_call.1} parent=0 // pred_check
    _
  $region7: #{tpu_custom_call.1} parent=0 // pred_check_branch
    %10 = sbr.rel (0) target = $region9
  $region8: #{tpu_custom_call.1} parent=0 // pred_region
    _
  $region9: #{tpu_custom_call.1} parent=0 // pred_fallthru
    _
  %v12 = vld [vmem:[%s0] sm:$0xf]
  %v13 = vld [vmem:[%s0 + $0x4] sm:$0xf]
  %v14 = vld [vmem:[%s0 + $0x8] sm:$0xf]
  %v15 = vld [vmem:[%s0 + $0xc] sm:$0xf]
  %v16 = vld [vmem:[%s0 + $0x10] sm:$0xf]
  %v17 = vld [vmem:[%s0 + $0x14] sm:$0xf]
  %v18 = vld [vmem:[%s0 + $0x18] sm:$0xf]
  %v19 = vld [vmem:[%s1] sm:$0xff]
  %v20 = vld [vmem:[%s1 + $0x8] sm:$0xff]
  %v21 = vld [vmem:[%s1 + $0x10] sm:$0xff]
  %v22 = vld [vmem:[%s1 + $0x18] sm:$0xff]
  %v23 = vld [vmem:[%s1 + $0x20] sm:$0x33]
  %v31 = vunpack.c.l.b16 %v12
  %v32 = vunpack.c.l.b16 %v13
  %v33 = vunpack.c.l.b16 %v14
  %v34 = vunpack.c.l.b16 %v15
  %v35 = vunpack.c.l.b16 %v16
  %v36 = vunpack.c.l.b16 %v17
  %v37 = vunpack.c.l.b16 %v18
  %v38 = vpack.c.b16 %v32, %v31
  %v39 = vpack.c.b16 %v34, %v33
  %v40 = vpack.c.b16 %v36, %v35
  %v41 = vpack.c.b16 %v37, %v37
  %v47 = vunpack.c.l.b16 %v19
  %v48 = vunpack.c.h.b16 %v19
  %v49 = vunpack.c.l.b16 %v20
  %v50 = vunpack.c.h.b16 %v20
  %v51 = vunpack.c.l.b16 %v21
  %v52 = vunpack.c.h.b16 %v21
  %v53 = vunpack.c.l.b16 %v22
  %v54 = vunpack.c.h.b16 %v22
  %v55 = vunpack.c.l.b16 %v23
  %v56 = vunpack.c.h.b16 %v23
  %v57 = vpack.c.b16 %v49, %v47
  %v58 = vpack.c.b16 %v50, %v48
  %v59 = vpack.c.b16 %v53, %v51
  %v60 = vpack.c.b16 %v54, %v52
  %v61 = vpack.c.b16 %v55, %v55
  %v62 = vpack.c.b16 %v56, %v56
  %vm67 = vcmask 285696
  %v69 = vsel %vm67, %v38, 0
  %v72 = vsel %vm67, %v39, 0
  %v75 = vsel %vm67, %v40, 0
  %v78 = vsel %vm67, %v41, 0
  %vm80 = vcmask 1040384
  %vm81 = vcmask 1041408
  %v82 = vsel %vm80, 4294967295, 65535
  %v83 = vsel %vm81, %v82, 0
  %v85 = vand.u32 %v61, %v83
  %v88 = vand.u32 %v62, %v83
  %90 = vmatpush.bf16.msra.mxu0 0
  %91 = vmatpush.bf16.msra.mxu0 0
  %92 = vmatpush.bf16.msra.mxu0 0
  %93 = vmatpush.bf16.msra.mxu0 0
  %94 = vmatpush.bf16.msra.mxu0 0
  %95 = vmatpush.bf16.msra.mxu0 %v85
  %96 = vmatpush.bf16.msra.mxu0 %v59
  %97 = vmatpush.bf16.msra.mxu0 %v57
  %98 = vmatmul.bf16.gmra.mxu0 %v69
  %v99 = vpop.f32.mrf.mxu0
  %v100 = vadd.f32 0.0, %v99
  %v101 = vpop.f32.mrf.mxu0
  %v102 = vadd.f32 0.0, %v101
  %103 = vmatmul.bf16.gmra.mxu0 %v72
  %v104 = vpop.f32.mrf.mxu0
  %v105 = vadd.f32 0.0, %v104
  %v106 = vpop.f32.mrf.mxu0
  %v107 = vadd.f32 0.0, %v106
  %108 = vmatmul.bf16.gmra.mxu0 %v75
  %v109 = vpop.f32.mrf.mxu0
  %v110 = vadd.f32 0.0, %v109
  %v111 = vpop.f32.mrf.mxu0
  %v112 = vadd.f32 0.0, %v111
  %113 = vmatmul.bf16.gmra.mxu0 %v78
  %v114 = vpop.f32.mrf.mxu0
  %v115 = vadd.f32 0.0, %v114
  %v116 = vpop.f32.mrf.mxu0
  %117 = vdwg.mxu0
  %118 = vmatpush.bf16.msra.mxu0 0
  %119 = vmatpush.bf16.msra.mxu0 0
  %120 = vmatpush.bf16.msra.mxu0 0
  %121 = vmatpush.bf16.msra.mxu0 0
  %122 = vmatpush.bf16.msra.mxu0 0
  %123 = vmatpush.bf16.msra.mxu0 %v88
  %124 = vmatpush.bf16.msra.mxu0 %v60
  %125 = vmatpush.bf16.msra.mxu0 %v58
  %126 = vmatmul.bf16.gmra.mxu0 %v69
  %v127 = vpop.f32.mrf.mxu0
  %v128 = vadd.f32 0.0, %v127
  %v129 = vpop.f32.mrf.mxu0
  %v130 = vadd.f32 0.0, %v129
  %131 = vmatmul.bf16.gmra.mxu0 %v72
  %v132 = vpop.f32.mrf.mxu0
  %v133 = vadd.f32 0.0, %v132
  %v134 = vpop.f32.mrf.mxu0
  %v135 = vadd.f32 0.0, %v134
  %136 = vmatmul.bf16.gmra.mxu0 %v75
  %v137 = vpop.f32.mrf.mxu0
  %v138 = vadd.f32 0.0, %v137
  %v139 = vpop.f32.mrf.mxu0
  %v140 = vadd.f32 0.0, %v139
  %141 = vmatmul.bf16.gmra.mxu0 %v78
  %v142 = vpop.f32.mrf.mxu0
  %v143 = vadd.f32 0.0, %v142
  %v144 = vpop.f32.mrf.mxu0
  %145 = vdwg.mxu0
  %v146 = vmax.f32 %v100, 0.0
  %v147 = vmax.f32 %v128, 0.0
  %v148 = vmax.f32 %v102, 0.0
  %v149 = vmax.f32 %v130, 0.0
  %v150 = vmax.f32 %v105, 0.0
  %v151 = vmax.f32 %v133, 0.0
  %v152 = vmax.f32 %v107, 0.0
  %v153 = vmax.f32 %v135, 0.0
  %v154 = vmax.f32 %v110, 0.0
  %v155 = vmax.f32 %v138, 0.0
  %v156 = vmax.f32 %v112, 0.0
  %v157 = vmax.f32 %v140, 0.0
  %v158 = vmax.f32 %v115, 0.0
  %v159 = vmax.f32 %v143, 0.0
  %v160 = vpack.c.bf16 %v148, %v146
  %v161 = vpack.c.bf16 %v149, %v147
  %v162 = vpack.c.bf16 %v152, %v150
  %v163 = vpack.c.bf16 %v153, %v151
  %v164 = vpack.c.bf16 %v156, %v154
  %v165 = vpack.c.bf16 %v157, %v155
  %v166 = vpack.c.bf16 %v158, %v158
  %v167 = vpack.c.bf16 %v159, %v159
  %v168 = vld [vmem:[%s1 + $0x30] sm:$0xf]
  %v169 = vld [vmem:[%s1 + $0x38] sm:$0xf]
  %v170 = vld [vmem:[%s1 + $0x40] sm:$0xf]
  %v171 = vld [vmem:[%s1 + $0x48] sm:$0xf]
  %v172 = vld [vmem:[%s1 + $0x50] sm:$0xf]
  %v173 = vld [vmem:[%s1 + $0x58] sm:$0xf]
  %v174 = vld [vmem:[%s1 + $0x60] sm:$0xf]
  %v175 = vld [vmem:[%s1 + $0x68] sm:$0xf]
  %v176 = vld [vmem:[%s1 + $0x70] sm:$0xf]
  %v177 = vld [vmem:[%s1 + $0x78] sm:$0xf]
  %v178 = vld [vmem:[%s1 + $0x80] sm:$0xf]
  %v179 = vld [vmem:[%s1 + $0x88] sm:$0xf]
  %v180 = vld [vmem:[%s1 + $0x90] sm:$0xf]
  %v181 = vld [vmem:[%s1 + $0x98] sm:$0xf]
  %v182 = vld [vmem:[%s1 + $0xa0] sm:$0xf]
  %v183 = vld [vmem:[%s1 + $0xa8] sm:$0xf]
  %v184 = vld [vmem:[%s1 + $0xb0] sm:$0xf]
  %v185 = vld [vmem:[%s1 + $0xb8] sm:$0xf]
  %v186 = vld [vmem:[%s1 + $0xc0] sm:$0xf]
  %v187 = vld [vmem:[%s1 + $0xc8] sm:$0xf]
  %v188 = vld [vmem:[%s1 + $0xd0] sm:$0x1]
  %v210 = vunpack.c.l.b16 %v168
  %v211 = vunpack.c.l.b16 %v169
  %v212 = vunpack.c.l.b16 %v170
  %v213 = vunpack.c.l.b16 %v171
  %v214 = vunpack.c.l.b16 %v172
  %v215 = vunpack.c.l.b16 %v173
  %v216 = vunpack.c.l.b16 %v174
  %v217 = vunpack.c.l.b16 %v175
  %v218 = vunpack.c.l.b16 %v176
  %v219 = vunpack.c.l.b16 %v177
  %v220 = vunpack.c.l.b16 %v178
  %v221 = vunpack.c.l.b16 %v179
  %v222 = vunpack.c.l.b16 %v180
  %v223 = vunpack.c.l.b16 %v181
  %v224 = vunpack.c.l.b16 %v182
  %v225 = vunpack.c.l.b16 %v183
  %v226 = vunpack.c.l.b16 %v184
  %v227 = vunpack.c.l.b16 %v185
  %v228 = vunpack.c.l.b16 %v186
  %v229 = vunpack.c.l.b16 %v187
  %v230 = vunpack.c.l.b16 %v188
  %v231 = vpack.c.b16 %v211, %v210
  %v232 = vpack.c.b16 %v213, %v212
  %v233 = vpack.c.b16 %v215, %v214
  %v234 = vpack.c.b16 %v217, %v216
  %v235 = vpack.c.b16 %v219, %v218
  %v236 = vpack.c.b16 %v221, %v220
  %v237 = vpack.c.b16 %v223, %v222
  %v238 = vpack.c.b16 %v225, %v224
  %v239 = vpack.c.b16 %v227, %v226
  %v240 = vpack.c.b16 %v229, %v228
  %v241 = vpack.c.b16 %v230, %v230
  %vm252 = vcmask 269312
  %v254 = vsel %vm252, %v161, 0
  %v257 = vsel %vm252, %v163, 0
  %v260 = vsel %vm252, %v165, 0
  %v263 = vsel %vm252, %v167, 0
  %v265 = vsel 0, 4294967295, 65535
  %v266 = vsel %vm80, %v265, 0
  %v268 = vand.u32 %v241, %v266
  %270 = vmatpush.bf16.msra.mxu0 %v238
  %271 = vmatpush.bf16.msra.mxu0 %v237
  %272 = vmatpush.bf16.msra.mxu0 %v236
  %273 = vmatpush.bf16.msra.mxu0 %v235
  %274 = vmatpush.bf16.msra.mxu0 %v234
  %275 = vmatpush.bf16.msra.mxu0 %v233
  %276 = vmatpush.bf16.msra.mxu0 %v232
  %277 = vmatpush.bf16.msra.mxu0 %v231
  %278 = vmatmul.bf16.gmra.mxu0 %v160
  %v279 = vpop.f32.mrf.mxu0
  %v280 = vadd.f32 0.0, %v279
  %v281 = vpop.f32.mrf.mxu0
  %v282 = vadd.f32 0.0, %v281
  %283 = vmatmul.bf16.gmra.mxu0 %v162
  %v284 = vpop.f32.mrf.mxu0
  %v285 = vadd.f32 0.0, %v284
  %v286 = vpop.f32.mrf.mxu0
  %v287 = vadd.f32 0.0, %v286
  %288 = vmatmul.bf16.gmra.mxu0 %v164
  %v289 = vpop.f32.mrf.mxu0
  %v290 = vadd.f32 0.0, %v289
  %v291 = vpop.f32.mrf.mxu0
  %v292 = vadd.f32 0.0, %v291
  %293 = vmatmul.bf16.gmra.mxu0 %v166
  %v294 = vpop.f32.mrf.mxu0
  %v295 = vadd.f32 0.0, %v294
  %v296 = vpop.f32.mrf.mxu0
  %297 = vdwg.mxu0
  %298 = vmatpush.bf16.msra.mxu0 0
  %299 = vmatpush.bf16.msra.mxu0 0
  %300 = vmatpush.bf16.msra.mxu0 0
  %301 = vmatpush.bf16.msra.mxu0 0
  %302 = vmatpush.bf16.msra.mxu0 0
  %303 = vmatpush.bf16.msra.mxu0 %v268
  %304 = vmatpush.bf16.msra.mxu0 %v240
  %305 = vmatpush.bf16.msra.mxu0 %v239
  %306 = vmatmul.bf16.gmra.mxu0 %v254
  %v307 = vpop.f32.mrf.mxu0
  %v308 = vadd.f32 %v280, %v307
  %v309 = vpop.f32.mrf.mxu0
  %v310 = vadd.f32 %v282, %v309
  %311 = vmatmul.bf16.gmra.mxu0 %v257
  %v312 = vpop.f32.mrf.mxu0
  %v313 = vadd.f32 %v285, %v312
  %v314 = vpop.f32.mrf.mxu0
  %v315 = vadd.f32 %v287, %v314
  %316 = vmatmul.bf16.gmra.mxu0 %v260
  %v317 = vpop.f32.mrf.mxu0
  %v318 = vadd.f32 %v290, %v317
  %v319 = vpop.f32.mrf.mxu0
  %v320 = vadd.f32 %v292, %v319
  %321 = vmatmul.bf16.gmra.mxu0 %v263
  %v322 = vpop.f32.mrf.mxu0
  %v323 = vadd.f32 %v295, %v322
  %v324 = vpop.f32.mrf.mxu0
  %325 = vdwg.mxu0
  %v326 = vmax.f32 %v308, 0.0
  %v327 = vmax.f32 %v310, 0.0
  %v328 = vmax.f32 %v313, 0.0
  %v329 = vmax.f32 %v315, 0.0
  %v330 = vmax.f32 %v318, 0.0
  %v331 = vmax.f32 %v320, 0.0
  %v332 = vmax.f32 %v323, 0.0
  %v333 = vpack.c.bf16 %v327, %v326
  %v334 = vpack.c.bf16 %v329, %v328
  %v335 = vpack.c.bf16 %v331, %v330
  %v336 = vpack.c.bf16 %v332, %v332
  %v337 = vld [vmem:[%s1 + $0xe0] sm:$0xf]
  %v338 = vld [vmem:[%s1 + $0xe8] sm:$0xf]
  %v339 = vld [vmem:[%s1 + $0xf0] sm:$0xf]
  %v340 = vld [vmem:[%s1 + $0xf8] sm:$0xf]
  %v341 = vld [vmem:[%s1 + $0x100] sm:$0xf]
  %v342 = vld [vmem:[%s1 + $0x108] sm:$0xf]
  %v343 = vld [vmem:[%s1 + $0x110] sm:$0xf]
  %v344 = vld [vmem:[%s1 + $0x118] sm:$0xf]
  %v345 = vld [vmem:[%s1 + $0x120] sm:$0xf]
  %v346 = vld [vmem:[%s1 + $0x128] sm:$0xf]
  %v347 = vld [vmem:[%s1 + $0x130] sm:$0x1]
  %v359 = vunpack.c.l.b16 %v337
  %v360 = vunpack.c.l.b16 %v338
  %v361 = vunpack.c.l.b16 %v339
  %v362 = vunpack.c.l.b16 %v340
  %v363 = vunpack.c.l.b16 %v341
  %v364 = vunpack.c.l.b16 %v342
  %v365 = vunpack.c.l.b16 %v343
  %v366 = vunpack.c.l.b16 %v344
  %v367 = vunpack.c.l.b16 %v345
  %v368 = vunpack.c.l.b16 %v346
  %v369 = vunpack.c.l.b16 %v347
  %v370 = vpack.c.b16 %v360, %v359
  %v371 = vpack.c.b16 %v362, %v361
  %v372 = vpack.c.b16 %v364, %v363
  %v373 = vpack.c.b16 %v366, %v365
  %v374 = vpack.c.b16 %v368, %v367
  %v375 = vpack.c.b16 %v369, %v369
  %vm381 = vcmask 662528
  %v383 = vsel %vm381, %v333, 0
  %v386 = vsel %vm381, %v334, 0
  %v389 = vsel %vm381, %v335, 0
  %v392 = vsel %vm381, %v336, 0
  %v395 = vand.u32 %v375, %v266
  %397 = vmatpush.bf16.msra.mxu0 0
  %398 = vmatpush.bf16.msra.mxu0 0
  %399 = vmatpush.bf16.msra.mxu0 %v395
  %400 = vmatpush.bf16.msra.mxu0 %v374
  %401 = vmatpush.bf16.msra.mxu0 %v373
  %402 = vmatpush.bf16.msra.mxu0 %v372
  %403 = vmatpush.bf16.msra.mxu0 %v371
  %404 = vmatpush.bf16.msra.mxu0 %v370
  %405 = vmatmul.bf16.gmra.mxu0 %v383
  %v406 = vpop.f32.mrf.mxu0
  %v407 = vadd.f32 0.0, %v406
  %v408 = vpop.f32.mrf.mxu0
  %v409 = vadd.f32 0.0, %v408
  %410 = vmatmul.bf16.gmra.mxu0 %v386
  %v411 = vpop.f32.mrf.mxu0
  %v412 = vadd.f32 0.0, %v411
  %v413 = vpop.f32.mrf.mxu0
  %v414 = vadd.f32 0.0, %v413
  %415 = vmatmul.bf16.gmra.mxu0 %v389
  %v416 = vpop.f32.mrf.mxu0
  %v417 = vadd.f32 0.0, %v416
  %v418 = vpop.f32.mrf.mxu0
  %v419 = vadd.f32 0.0, %v418
  %420 = vmatmul.bf16.gmra.mxu0 %v392
  %v421 = vpop.f32.mrf.mxu0
  %v422 = vadd.f32 0.0, %v421
  %v423 = vpop.f32.mrf.mxu0
  %424 = vdwg.mxu0
  %v425 = vmax.f32 %v407, 0.0
  %v426 = vmax.f32 %v409, 0.0
  %v427 = vmax.f32 %v412, 0.0
  %v428 = vmax.f32 %v414, 0.0
  %v429 = vmax.f32 %v417, 0.0
  %v430 = vmax.f32 %v419, 0.0
  %v431 = vmax.f32 %v422, 0.0
  %v432 = vpack.c.bf16 %v426, %v425
  %v433 = vpack.c.bf16 %v428, %v427
  %v434 = vpack.c.bf16 %v430, %v429
  %v435 = vpack.c.bf16 %v431, %v431
  %v436 = vld [vmem:[%s1 + $0x140] sm:$0xf]
  %v437 = vld [vmem:[%s1 + $0x148] sm:$0xf]
  %v438 = vld [vmem:[%s1 + $0x150] sm:$0xf]
  %v439 = vld [vmem:[%s1 + $0x158] sm:$0xf]
  %v440 = vld [vmem:[%s1 + $0x160] sm:$0xf]
  %v441 = vld [vmem:[%s1 + $0x168] sm:$0xf]
  %v442 = vld [vmem:[%s1 + $0x170] sm:$0xf]
  %v443 = vld [vmem:[%s1 + $0x178] sm:$0xf]
  %v444 = vld [vmem:[%s1 + $0x180] sm:$0x7]
  %v454 = vunpack.c.l.b16 %v436
  %v455 = vunpack.c.l.b16 %v437
  %v456 = vunpack.c.l.b16 %v438
  %v457 = vunpack.c.l.b16 %v439
  %v458 = vunpack.c.l.b16 %v440
  %v459 = vunpack.c.l.b16 %v441
  %v460 = vunpack.c.l.b16 %v442
  %v461 = vunpack.c.l.b16 %v443
  %v462 = vunpack.c.l.b16 %v444
  %v463 = vpack.c.b16 %v455, %v454
  %v464 = vpack.c.b16 %v457, %v456
  %v465 = vpack.c.b16 %v459, %v458
  %v466 = vpack.c.b16 %v461, %v460
  %v467 = vpack.c.b16 %v462, %v462
  %vm472 = vcmask 564224
  %v474 = vsel %vm472, %v432, 0
  %v477 = vsel %vm472, %v433, 0
  %v480 = vsel %vm472, %v434, 0
  %v483 = vsel %vm472, %v435, 0
  %vm485 = vcmask 1042432
  %v486 = vsel %vm81, 4294967295, 65535
  %v487 = vsel %vm485, %v486, 0
  %v489 = vand.u32 %v467, %v487
  %491 = vmatpush.bf16.msra.mxu0 0
  %492 = vmatpush.bf16.msra.mxu0 0
  %493 = vmatpush.bf16.msra.mxu0 0
  %494 = vmatpush.bf16.msra.mxu0 %v489
  %495 = vmatpush.bf16.msra.mxu0 %v466
  %496 = vmatpush.bf16.msra.mxu0 %v465
  %497 = vmatpush.bf16.msra.mxu0 %v464
  %498 = vmatpush.bf16.msra.mxu0 %v463
  %499 = vmatmul.bf16.gmra.mxu0 %v474
  %v500 = vpop.f32.mrf.mxu0
  %v501 = vadd.f32 0.0, %v500
  %v502 = vpop.f32.mrf.mxu0
  %v503 = vadd.f32 0.0, %v502
  %504 = vmatmul.bf16.gmra.mxu0 %v477
  %v505 = vpop.f32.mrf.mxu0
  %v506 = vadd.f32 0.0, %v505
  %v507 = vpop.f32.mrf.mxu0
  %v508 = vadd.f32 0.0, %v507
  %509 = vmatmul.bf16.gmra.mxu0 %v480
  %v510 = vpop.f32.mrf.mxu0
  %v511 = vadd.f32 0.0, %v510
  %v512 = vpop.f32.mrf.mxu0
  %v513 = vadd.f32 0.0, %v512
  %514 = vmatmul.bf16.gmra.mxu0 %v483
  %v515 = vpop.f32.mrf.mxu0
  %v516 = vadd.f32 0.0, %v515
  %v517 = vpop.f32.mrf.mxu0
  %518 = vdwg.mxu0
  %v519 = vmax.f32 %v501, 0.0
  %v520 = vmax.f32 %v503, 0.0
  %v521 = vmax.f32 %v506, 0.0
  %v522 = vmax.f32 %v508, 0.0
  %v523 = vmax.f32 %v511, 0.0
  %v524 = vmax.f32 %v513, 0.0
  %v525 = vmax.f32 %v516, 0.0
  %vm526 = vcmask 171008
  %527 = vst.msk [vmem:[%s2] sm:$0xff] %vm526, %v519
  %528 = vst.msk [vmem:[%s2 + $0x8] sm:$0xff] %vm526, %v520
  %529 = vst.msk [vmem:[%s2 + $0x10] sm:$0xff] %vm526, %v521
  %530 = vst.msk [vmem:[%s2 + $0x18] sm:$0xff] %vm526, %v522
  %531 = vst.msk [vmem:[%s2 + $0x20] sm:$0xff] %vm526, %v523
  %532 = vst.msk [vmem:[%s2 + $0x28] sm:$0xff] %vm526, %v524
  %533 = vst.msk [vmem:[%s2 + $0x30] sm:$0xff] %vm526, %v525
  // Predicated region
  $region10: #{tpu_custom_call.1} parent=0 // pred_check
    _
  $region11: #{tpu_custom_call.1} parent=0 // pred_check_branch
    %535 = sbr.rel (0) target = $region13
  $region12: #{tpu_custom_call.1} parent=0 // pred_region
    _
  $region13: #{tpu_custom_call.1} parent=0 // pred_fallthru
    _
  // Predicated region
  $region14: #{tpu_custom_call.1} parent=0 // pred_check
    _
  $region15: #{tpu_custom_call.1} parent=0 // pred_check_branch
    %537 = sbr.rel (0) target = $region17
  $region16: #{tpu_custom_call.1} parent=0 // pred_region
    _
  $region17: #{tpu_custom_call.1} parent=0 // pred_fallthru
    _

</llo_original>
